<compile_context>
chip_gen: v5e
topology: v5e:2x2
jax: 0.10.0
libtpu: 0.0.40
codegen_flags: <defaults>
</compile_context>

<pallas_src>
import math

import jax
import jax.numpy as jnp
import numpy as np
from jax.experimental import pallas as pl
from jax.experimental.pallas import tpu as pltpu

B = 2            # batch
SEQ = 16         # sequence length
INPUT_DIM = 8    # input channels
HIDDEN_DIM = 32  # hidden channels
NUM_LAYER = 3    # 1 pointwise conv + (NUM_LAYER - 1) k=3 convs
DROPOUT = 0.0    # eval-mode forward: dropout == identity
BS = B * SEQ

HP = 128                       # lane-padded hidden dim (HIDDEN_DIM -> 128)
W0_OFF = 0                     # rows [0, INPUT_DIM): k=1 conv weight (in, out)
BIAS_OFF = INPUT_DIM           # rows [8, 16): row l = bias of layer l (lanes padded)
TAPS_OFF = BIAS_OFF + 8        # then 3*(NUM_LAYER-1) blocks of (HP, HP) tap weights
SLAB_ROWS = TAPS_OFF + 3 * (NUM_LAYER - 1) * HP


def cnn_kernel(x_ref, p_ref, o_ref):
    # Static, tile-aligned views into the fused parameter slab.
    bias = p_ref[BIAS_OFF:BIAS_OFF + 8, :]                       # (8, HP) f32
    w0 = p_ref[W0_OFF:W0_OFF + INPUT_DIM, :].astype(jnp.bfloat16)

    # Layer 0: Conv1d(k=1) == per-position linear over channels, then tanh (f32).
    # Padded lanes: weight cols and bias lanes are zero -> tanh(0) = 0 stays zero.
    h = jnp.tanh(
        jnp.dot(x_ref[...].astype(jnp.bfloat16), w0,
                preferred_element_type=jnp.float32)
        + bias[0:1, :])                                          # (BS, HP)

    # Boundary masks for the shifted taps, hoisted out of the layer loop.
    # Row r = b*SEQ + s; the s-1 tap is zero at s == 0, the s+1 tap at s == SEQ-1.
    row = jax.lax.broadcasted_iota(jnp.int32, (BS, 1), 0)
    s_idx = row % SEQ
    not_first = (s_idx != 0).astype(jnp.float32)                 # (BS, 1)
    not_last = (s_idx != SEQ - 1).astype(jnp.float32)            # (BS, 1)

    for l in range(NUM_LAYER - 1):                               # static -> unrolled
        base = TAPS_OFF + l * 3 * HP
        w_prev = p_ref[base:base + HP, :].astype(jnp.bfloat16)       # tap s-1
        w_mid = p_ref[base + HP:base + 2 * HP, :].astype(jnp.bfloat16)   # tap s
        w_next = p_ref[base + 2 * HP:base + 3 * HP, :].astype(jnp.bfloat16)  # tap s+1

        # Sublane rotations (XLU slot) + masks build the shifted activations.
        h_prev = (pltpu.roll(h, 1, 0) * not_first).astype(jnp.bfloat16)
        h_next = (pltpu.roll(h, BS - 1, 0) * not_last).astype(jnp.bfloat16)

        # Three MXU pushes accumulated in f32 (no lane-axis concat / relayout).
        acc = jnp.dot(h_prev, w_prev, preferred_element_type=jnp.float32)
        acc = acc + jnp.dot(h.astype(jnp.bfloat16), w_mid,
                            preferred_element_type=jnp.float32)
        acc = acc + jnp.dot(h_next, w_next,
                            preferred_element_type=jnp.float32)
        h = jnp.tanh(acc + bias[l + 1:l + 2, :])
    o_ref[...] = h.astype(o_ref.dtype)                           # lane-dense store


def pack_params(p):
    """Fuse all torch-layout Conv1d params into one tile-aligned (SLAB_ROWS, 128) slab."""
    w0 = jnp.transpose(p["w0"][:, :, 0], (1, 0))                 # (INPUT_DIM, H)
    w0p = jnp.zeros((INPUT_DIM, HP), jnp.float32).at[:, :HIDDEN_DIM].set(w0)

    bias_block = jnp.zeros((8, HP), jnp.float32)
    bias_block = bias_block.at[0, :HIDDEN_DIM].set(p["b0"])
    for l in range(NUM_LAYER - 1):
        bias_block = bias_block.at[l + 1, :HIDDEN_DIM].set(p["b"][l])

    tap_blocks = []
    for l in range(NUM_LAYER - 1):
        for t in range(3):                                       # taps s-1, s, s+1
            w = jnp.transpose(p["w"][l][:, :, t], (1, 0))        # (H_in, H_out)
            tap_blocks.append(
                jnp.zeros((HP, HP), jnp.float32).at[:HIDDEN_DIM, :HIDDEN_DIM].set(w))

    slab = jnp.concatenate([w0p, bias_block] + tap_blocks, axis=0)
    assert slab.shape == (SLAB_ROWS, HP)
    return slab


def cnn_model(x, params):
    """x: (B, SEQ, INPUT_DIM) f32 -> (B, SEQ, HIDDEN_DIM) f32."""
    slab = pack_params(params)
    x2d = x.reshape(BS, INPUT_DIM)                               # channels-last rows
    vmem = pl.BlockSpec(memory_space=pltpu.MemorySpace.VMEM)
    flops = 2 * BS * INPUT_DIM * HP + (NUM_LAYER - 1) * 3 * 2 * BS * HP * HP
    bytes_accessed = 4 * (BS * INPUT_DIM + SLAB_ROWS * HP + BS * HP)
    out2d = pl.pallas_call(
        cnn_kernel,
        out_shape=jax.ShapeDtypeStruct((BS, HP), jnp.float32),
        in_specs=[vmem, vmem],
        out_specs=vmem,
        cost_estimate=pl.CostEstimate(
            flops=flops,
            transcendentals=NUM_LAYER * BS * HP,
            bytes_accessed=bytes_accessed),
    )(x2d, slab)
    return out2d[:, :HIDDEN_DIM].reshape(B, SEQ, HIDDEN_DIM)


def init_params(key):
    """PyTorch-layout Conv1d params: weight (C_out, C_in, k), bias (C_out,)."""
    ks = jax.random.split(key, 2 * NUM_LAYER)

    def uniform(k, shape, fan_in):
        bound = 1.0 / math.sqrt(fan_in)
        return jax.random.uniform(k, shape, jnp.float32, -bound, bound)

    return {
        "w0": uniform(ks[0], (HIDDEN_DIM, INPUT_DIM, 1), INPUT_DIM),
        "b0": uniform(ks[1], (HIDDEN_DIM,), INPUT_DIM),
        "w": [uniform(ks[2 + 2 * l], (HIDDEN_DIM, HIDDEN_DIM, 3), 3 * HIDDEN_DIM)
              for l in range(NUM_LAYER - 1)],
        "b": [uniform(ks[3 + 2 * l], (HIDDEN_DIM,), 3 * HIDDEN_DIM)
              for l in range(NUM_LAYER - 1)],
    }


def reference(x, p):
    """Pure-JAX reference of the same forward (f32-exact convs)."""
    dn = ("NCH", "OIH", "NCH")
    h = jnp.transpose(x, (0, 2, 1))                              # (B, C_in, S)
    h = jax.lax.conv_general_dilated(
        h, p["w0"], window_strides=(1,), padding=[(0, 0)],
        dimension_numbers=dn, precision=jax.lax.Precision.HIGHEST)
    h = jnp.tanh(h + p["b0"][None, :, None])
    for l in range(NUM_LAYER - 1):
        h = jax.lax.conv_general_dilated(
            h, p["w"][l], window_strides=(1,), padding=[(1, 1)],
            dimension_numbers=dn, precision=jax.lax.Precision.HIGHEST)
        h = jnp.tanh(h + p["b"][l][None, :, None])
    return jnp.transpose(h, (0, 2, 1))                           # (B, S, HIDDEN_DIM)


if __name__ == "__main__":
    key = jax.random.PRNGKey(0)
    kx, kp = jax.random.split(key)
    x = jax.random.normal(kx, (B, SEQ, INPUT_DIM), jnp.float32)
    params = init_params(kp)

    out = jax.block_until_ready(cnn_model(x, params))
    ref = reference(x, params)

    # MXU operands are bf16 (single-pass matmuls); tanh keeps activations in
    # [-1, 1], so a 2e-2 tolerance comfortably covers the per-layer rounding.
    np.testing.assert_allclose(np.asarray(out), np.asarray(ref), rtol=2e-2, atol=2e-2)
    assert out.shape == (B, SEQ, HIDDEN_DIM) and bool(jnp.all(jnp.isfinite(out)))
    print("KERNEL_OK")
</pallas_src>

<mosaic_0001>
module attributes {stable_mosaic.version = 11 : i64} {
  func.func @cnn_kernel(%arg0: memref<32x8xf32, #tpu.memory_space<vmem>>, %arg1: memref<784x128xf32, #tpu.memory_space<vmem>>, %arg2: memref<32x128xf32, #tpu.memory_space<vmem>>) attributes {dimension_semantics = [], scalar_prefetch = 0 : i64, scratch_operands = 0 : i64, tpu.core_type = #tpu.core_type<tc>} {
    %c8 = arith.constant 8 : index
    %c0 = arith.constant 0 : index
    %0 = vector.load %arg1[%c8, %c0] : memref<784x128xf32, #tpu.memory_space<vmem>>, vector<8x128xf32>
    %c0_0 = arith.constant 0 : index
    %c0_1 = arith.constant 0 : index
    %1 = vector.load %arg1[%c0_0, %c0_1] : memref<784x128xf32, #tpu.memory_space<vmem>>, vector<8x128xf32>
    %2 = arith.truncf %1 : vector<8x128xf32> to vector<8x128xbf16>
    %c0_2 = arith.constant 0 : index
    %c0_3 = arith.constant 0 : index
    %3 = vector.load %arg0[%c0_2, %c0_3] : memref<32x8xf32, #tpu.memory_space<vmem>>, vector<32x8xf32>
    %4 = arith.truncf %3 : vector<32x8xf32> to vector<32x8xbf16>
    %cst = arith.constant dense<0.000000e+00> : vector<32x128xf32>
    %5 = tpu.matmul %4, %2, %cst {dimension_numbers = #tpu.dot_dimension_numbers<[1], [0], [0], [1], [0, 0, 1, 1], [], []>} : vector<32x8xbf16>, vector<8x128xbf16>, vector<32x128xf32> -> vector<32x128xf32>
    %6 = vector.extract_strided_slice %0 {offsets = [0, 0], sizes = [1, 128], strides = [1, 1]} : vector<8x128xf32> to vector<1x128xf32>
    %7 = vector.broadcast %6 : vector<1x128xf32> to vector<32x128xf32>
    %8 = arith.addf %5, %7 : vector<32x128xf32>
    %9 = math.tanh %8 : vector<32x128xf32>
    %10 = tpu.iota {dimensions = array<i32: 0>} : vector<32x1xi32>
    %c16_i32 = arith.constant 16 : i32
    %c0_i32 = arith.constant 0 : i32
    %11 = arith.cmpi eq, %c16_i32, %c0_i32 : i32
    %c1_i32 = arith.constant 1 : i32
    %12 = arith.select %11, %c1_i32, %c16_i32 : i32
    %13 = vector.broadcast %12 : i32 to vector<32x1xi32>
    %14 = arith.remsi %10, %13 : vector<32x1xi32>
    %c0_i32_4 = arith.constant 0 : i32
    %15 = vector.broadcast %c0_i32_4 : i32 to vector<32x1xi32>
    %16 = arith.cmpi ne, %14, %15 : vector<32x1xi32>
    %c0_i32_5 = arith.constant 0 : i32
    %17 = vector.broadcast %c0_i32_5 : i32 to vector<32x1xi32>
    %18 = arith.cmpi slt, %14, %17 : vector<32x1xi32>
    %c0_i32_6 = arith.constant 0 : i32
    %19 = arith.cmpi slt, %12, %c0_i32_6 : i32
    %20 = vector.broadcast %19 : i1 to vector<32x1xi1>
    %21 = vector.broadcast %20 : vector<32x1xi1> to vector<32x1xi1>
    %22 = arith.xori %18, %21 : vector<32x1xi1>
    %23 = arith.andi %22, %16 : vector<32x1xi1>
    %24 = vector.broadcast %12 : i32 to vector<32x1xi32>
    %25 = arith.addi %14, %24 : vector<32x1xi32>
    %26 = arith.select %23, %25, %14 : vector<32x1xi1>, vector<32x1xi32>
    %c0_i32_7 = arith.constant 0 : i32
    %27 = vector.broadcast %c0_i32_7 : i32 to vector<32x1xi32>
    %28 = arith.cmpi ne, %26, %27 : vector<32x1xi32>
    %29 = arith.extui %28 : vector<32x1xi1> to vector<32x1xi32>
    %30 = arith.sitofp %29 : vector<32x1xi32> to vector<32x1xf32>
    %c15_i32 = arith.constant 15 : i32
    %31 = vector.broadcast %c15_i32 : i32 to vector<32x1xi32>
    %32 = arith.cmpi ne, %26, %31 : vector<32x1xi32>
    %33 = arith.extui %32 : vector<32x1xi1> to vector<32x1xi32>
    %34 = arith.sitofp %33 : vector<32x1xi32> to vector<32x1xf32>
    %c16 = arith.constant 16 : index
    %c0_8 = arith.constant 0 : index
    %35 = vector.load %arg1[%c16, %c0_8] : memref<784x128xf32, #tpu.memory_space<vmem>>, vector<128x128xf32>
    %36 = arith.truncf %35 : vector<128x128xf32> to vector<128x128xbf16>
    %c144 = arith.constant 144 : index
    %c0_9 = arith.constant 0 : index
    %37 = vector.load %arg1[%c144, %c0_9] : memref<784x128xf32, #tpu.memory_space<vmem>>, vector<128x128xf32>
    %38 = arith.truncf %37 : vector<128x128xf32> to vector<128x128xbf16>
    %c272 = arith.constant 272 : index
    %c0_10 = arith.constant 0 : index
    %39 = vector.load %arg1[%c272, %c0_10] : memref<784x128xf32, #tpu.memory_space<vmem>>, vector<128x128xf32>
    %40 = arith.truncf %39 : vector<128x128xf32> to vector<128x128xbf16>
    %c1_i32_11 = arith.constant 1 : i32
    %41 = tpu.dynamic_rotate %9 by %c1_i32_11 dim 0 : vector<32x128xf32>, i32 -> vector<32x128xf32>
    %42 = vector.broadcast %30 : vector<32x1xf32> to vector<32x128xf32>
    %43 = arith.mulf %41, %42 : vector<32x128xf32>
    %44 = arith.truncf %43 : vector<32x128xf32> to vector<32x128xbf16>
    %c31_i32 = arith.constant 31 : i32
    %45 = tpu.dynamic_rotate %9 by %c31_i32 dim 0 : vector<32x128xf32>, i32 -> vector<32x128xf32>
    %46 = vector.broadcast %34 : vector<32x1xf32> to vector<32x128xf32>
    %47 = arith.mulf %45, %46 : vector<32x128xf32>
    %48 = arith.truncf %47 : vector<32x128xf32> to vector<32x128xbf16>
    %cst_12 = arith.constant dense<0.000000e+00> : vector<32x128xf32>
    %49 = tpu.matmul %44, %36, %cst_12 {dimension_numbers = #tpu.dot_dimension_numbers<[1], [0], [0], [1], [0, 0, 1, 1], [], []>} : vector<32x128xbf16>, vector<128x128xbf16>, vector<32x128xf32> -> vector<32x128xf32>
    %50 = arith.truncf %9 : vector<32x128xf32> to vector<32x128xbf16>
    %cst_13 = arith.constant dense<0.000000e+00> : vector<32x128xf32>
    %51 = tpu.matmul %50, %38, %cst_13 {dimension_numbers = #tpu.dot_dimension_numbers<[1], [0], [0], [1], [0, 0, 1, 1], [], []>} : vector<32x128xbf16>, vector<128x128xbf16>, vector<32x128xf32> -> vector<32x128xf32>
    %52 = arith.addf %49, %51 : vector<32x128xf32>
    %cst_14 = arith.constant dense<0.000000e+00> : vector<32x128xf32>
    %53 = tpu.matmul %48, %40, %cst_14 {dimension_numbers = #tpu.dot_dimension_numbers<[1], [0], [0], [1], [0, 0, 1, 1], [], []>} : vector<32x128xbf16>, vector<128x128xbf16>, vector<32x128xf32> -> vector<32x128xf32>
    %54 = arith.addf %52, %53 : vector<32x128xf32>
    %55 = vector.extract_strided_slice %0 {offsets = [1, 0], sizes = [1, 128], strides = [1, 1]} : vector<8x128xf32> to vector<1x128xf32>
    %56 = vector.broadcast %55 : vector<1x128xf32> to vector<32x128xf32>
    %57 = arith.addf %54, %56 : vector<32x128xf32>
    %58 = math.tanh %57 : vector<32x128xf32>
    %c400 = arith.constant 400 : index
    %c0_15 = arith.constant 0 : index
    %59 = vector.load %arg1[%c400, %c0_15] : memref<784x128xf32, #tpu.memory_space<vmem>>, vector<128x128xf32>
    %60 = arith.truncf %59 : vector<128x128xf32> to vector<128x128xbf16>
    %c528 = arith.constant 528 : index
    %c0_16 = arith.constant 0 : index
    %61 = vector.load %arg1[%c528, %c0_16] : memref<784x128xf32, #tpu.memory_space<vmem>>, vector<128x128xf32>
    %62 = arith.truncf %61 : vector<128x128xf32> to vector<128x128xbf16>
    %c656 = arith.constant 656 : index
    %c0_17 = arith.constant 0 : index
    %63 = vector.load %arg1[%c656, %c0_17] : memref<784x128xf32, #tpu.memory_space<vmem>>, vector<128x128xf32>
    %64 = arith.truncf %63 : vector<128x128xf32> to vector<128x128xbf16>
    %c1_i32_18 = arith.constant 1 : i32
    %65 = tpu.dynamic_rotate %58 by %c1_i32_18 dim 0 : vector<32x128xf32>, i32 -> vector<32x128xf32>
    %66 = vector.broadcast %30 : vector<32x1xf32> to vector<32x128xf32>
    %67 = arith.mulf %65, %66 : vector<32x128xf32>
    %68 = arith.truncf %67 : vector<32x128xf32> to vector<32x128xbf16>
    %c31_i32_19 = arith.constant 31 : i32
    %69 = tpu.dynamic_rotate %58 by %c31_i32_19 dim 0 : vector<32x128xf32>, i32 -> vector<32x128xf32>
    %70 = vector.broadcast %34 : vector<32x1xf32> to vector<32x128xf32>
    %71 = arith.mulf %69, %70 : vector<32x128xf32>
    %72 = arith.truncf %71 : vector<32x128xf32> to vector<32x128xbf16>
    %cst_20 = arith.constant dense<0.000000e+00> : vector<32x128xf32>
    %73 = tpu.matmul %68, %60, %cst_20 {dimension_numbers = #tpu.dot_dimension_numbers<[1], [0], [0], [1], [0, 0, 1, 1], [], []>} : vector<32x128xbf16>, vector<128x128xbf16>, vector<32x128xf32> -> vector<32x128xf32>
    %74 = arith.truncf %58 : vector<32x128xf32> to vector<32x128xbf16>
    %cst_21 = arith.constant dense<0.000000e+00> : vector<32x128xf32>
    %75 = tpu.matmul %74, %62, %cst_21 {dimension_numbers = #tpu.dot_dimension_numbers<[1], [0], [0], [1], [0, 0, 1, 1], [], []>} : vector<32x128xbf16>, vector<128x128xbf16>, vector<32x128xf32> -> vector<32x128xf32>
    %76 = arith.addf %73, %75 : vector<32x128xf32>
    %cst_22 = arith.constant dense<0.000000e+00> : vector<32x128xf32>
    %77 = tpu.matmul %72, %64, %cst_22 {dimension_numbers = #tpu.dot_dimension_numbers<[1], [0], [0], [1], [0, 0, 1, 1], [], []>} : vector<32x128xbf16>, vector<128x128xbf16>, vector<32x128xf32> -> vector<32x128xf32>
    %78 = arith.addf %76, %77 : vector<32x128xf32>
    %79 = vector.extract_strided_slice %0 {offsets = [2, 0], sizes = [1, 128], strides = [1, 1]} : vector<8x128xf32> to vector<1x128xf32>
    %80 = vector.broadcast %79 : vector<1x128xf32> to vector<32x128xf32>
    %81 = arith.addf %78, %80 : vector<32x128xf32>
    %82 = math.tanh %81 : vector<32x128xf32>
    %c0_23 = arith.constant 0 : index
    %c0_24 = arith.constant 0 : index
    %83 = vector.load %arg2[%c0_23, %c0_24] : memref<32x128xf32, #tpu.memory_space<vmem>>, vector<32x128xf32>
    tpu.vector_store %arg2[%c0_23, %c0_24], %82 {strides = array<i32>} : memref<32x128xf32, #tpu.memory_space<vmem>>, vector<32x128xf32>,
    return
  }
}

</mosaic_0001>

<llo_original>
// kernel: tpu_custom_call.1
$region0: #{tpu_custom_call.1}
  #allocation0 [shape = 'u32[]', space=smem, size = 0x4, offset = 0x4, fixed_abs, tag = 'smem constant byte address 0x4 - core index']
  #allocation1 [shape = 'u32[72,128]{1,0:T(1,128)}', space=vmem, size = 0x9000, scoped, tag = 'internal scratch']
  %s0 = inlined_call_operand.vmem [shape: f32[32,8], index: 0, kind: input, shape index: {}]
  %s1 = inlined_call_operand.hbm [shape: f32[784,128], index: 1, kind: input, shape index: {}]
  %s2 = inlined_call_operand.hbm [shape: f32[32,128], index: 2, kind: output, shape index: {}]
  %s3 = sld [smem:[#allocation0]]
  $region22: #{tpu_custom_call.1} parent=0
    _
  %s5 = ssub.s32 1, %s3
  %s6 = scalar_select 0, %s5, %s3
  $region1: #{tpu_custom_call.1} parent=0
    #allocation2 [shape = 'u8[401408]{0}', space=vmem, size = 0x62000, scoped, tag = 'input window, operand 1, single buffered']
    #allocation3 [shape = 's32[1]{0}', space=sflag, size = 0x4, scoped, tag = 'scoped memory for tpu_custom_call.1']
    #allocation4 [shape = 's32[1]{0}', space=sflag, size = 0x4, scoped, tag = 'scoped memory for tpu_custom_call.1']
    #allocation5 [shape = 'u8[16384]{0}', space=vmem, size = 0x4000, scoped, tag = 'output window, operand 0, single buffered']
    %7 = vsyncpa [#allocation3], 0
    %8 = vsyncpa [#allocation4], 0
    // Predicated region
    $region2: #{tpu_custom_call.1} parent=1 // pred_check
      _
    $region3: #{tpu_custom_call.1} parent=1 // pred_check_branch
      %10 = sbr.rel (0) target = $region5
    $region4: #{tpu_custom_call.1} parent=1 // pred_region
      _
    $region5: #{tpu_custom_call.1} parent=1 // pred_fallthru
      _
    // Predicated region
    $region6: #{tpu_custom_call.1} parent=1 // pred_check
      _
    $region7: #{tpu_custom_call.1} parent=1 // pred_check_branch
      %12 = sbr.rel (0) target = $region9
    $region8: #{tpu_custom_call.1} parent=1 // pred_region
      %14 = vsyncadd [#allocation3], 0
      %s15 = sshll.u32 %s1, 4
      %s16 = int_to_ptr.hbm [resolvable:$true] %s15
      %s17 = sshll.u32 [#allocation2], 4
      %s18 = int_to_ptr.vmem [resolvable:$true] %s17
      %23 = dma.hbm_to_vmem [thread:$0]  %s16, 12544, %s18, [#allocation3], 128, 128, 8
    $region9: #{tpu_custom_call.1} parent=1 // pred_fallthru
      _
    // Predicated region
    $region10: #{tpu_custom_call.1} parent=1 // pred_check
      _
    $region11: #{tpu_custom_call.1} parent=1 // pred_check_branch
      %25 = sbr.rel (0) target = $region13
    $region12: #{tpu_custom_call.1} parent=1 // pred_region
      %27 = dma.done [#allocation3], 12544
    $region13: #{tpu_custom_call.1} parent=1 // pred_fallthru
      _
    %v29 = vld [vmem:[#allocation2 + $0x8] sm:$0xff]
    %v30 = vld [vmem:[#allocation2] sm:$0xff]
    %v31 = vpack.c.bf16 %v30, %v30
    %v32 = vld [vmem:[%s0] sm:$0xff]
    %v33 = vld [vmem:[%s0 + $0x8] sm:$0xff]
    %v34 = vld [vmem:[%s0 + $0x10] sm:$0xff]
    %v35 = vld [vmem:[%s0 + $0x18] sm:$0xff]
    %v36 = vpack.c.bf16 %v33, %v32
    %v37 = vpack.c.bf16 %v35, %v34
    %v38 = vperm.slane %v29, 0
    %vm39 = vcmask 64512
    %v41 = vsel %vm39, %v36, 0
    %v44 = vsel %vm39, %v37, 0
    %vm46 = vcmask 1043456
    %v48 = vsel %vm46, %v31, 0
    %50 = vmatpush.bf16.msra.mxu0 0
    %51 = vmatpush.bf16.msra.mxu0 0
    %52 = vmatpush.bf16.msra.mxu0 0
    %53 = vmatpush.bf16.msra.mxu0 0
    %54 = vmatpush.bf16.msra.mxu0 0
    %55 = vmatpush.bf16.msra.mxu0 0
    %56 = vmatpush.bf16.msra.mxu0 0
    %57 = vmatpush.bf16.msra.mxu0 %v48
    %58 = vmatmul.bf16.gmra.mxu0 %v41
    %v59 = vpop.f32.mrf.mxu0
    %v60 = vadd.f32 %v38, %v59
    %v61 = vpop.f32.mrf.mxu0
    %v62 = vadd.f32 %v38, %v61
    %63 = vmatmul.bf16.gmra.mxu0 %v44
    %v64 = vpop.f32.mrf.mxu0
    %v65 = vadd.f32 %v38, %v64
    %v66 = vpop.f32.mrf.mxu0
    %v67 = vadd.f32 %v38, %v66
    %68 = vdwg.mxu0
    %v69 = vtanh.pop %v60
    %v70 = vtanh.pop %v62
    %v71 = vtanh.pop %v65
    %v72 = vtanh.pop %v67
    %v73 = vlaneseq
    %v74 = vshrl.u32 %v73, 7
    %v75 = vadd.s32 %v74, 8
    %v76 = vadd.s32 %v74, 16
    %v77 = vadd.s32 %v74, 24
    %vm78 = vcmp.lt.s32.totalorder %v74, 0
    %v79 = vsub.s32 0, %v74
    %v80 = vsel %vm78, %v79, %v74
    %v81 = vshrl.u32 %v80, 4
    %v82 = vand.u32 %v80, 15
    %v83 = vsub.s32 0, %v82
    %v84 = vsel %vm78, %v83, %v82
    %vm85 = vcmp.lt.s32.totalorder %v75, 0
    %v86 = vsub.s32 0, %v75
    %v87 = vsel %vm85, %v86, %v75
    %v88 = vshrl.u32 %v87, 4
    %v89 = vand.u32 %v87, 15
    %v90 = vsub.s32 0, %v89
    %v91 = vsel %vm85, %v90, %v89
    %vm92 = vcmp.lt.s32.totalorder %v76, 0
    %v93 = vsub.s32 0, %v76
    %v94 = vsel %vm92, %v93, %v76
    %v95 = vshrl.u32 %v94, 4
    %v96 = vand.u32 %v94, 15
    %v97 = vsub.s32 0, %v96
    %v98 = vsel %vm92, %v97, %v96
    %vm99 = vcmp.lt.s32.totalorder %v77, 0
    %v100 = vsub.s32 0, %v77
    %v101 = vsel %vm99, %v100, %v77
    %v102 = vshrl.u32 %v101, 4
    %v103 = vand.u32 %v101, 15
    %v104 = vsub.s32 0, %v103
    %v105 = vsel %vm99, %v104, %v103
    %vm106 = vcmp.ne.s32.totalorder %v84, 0
    %vm107 = vcmp.ne.s32.totalorder %v91, 0
    %vm108 = vcmp.ne.s32.totalorder %v98, 0
    %vm109 = vcmp.ne.s32.totalorder %v105, 0
    %vm110 = vcmp.lt.s32.totalorder %v84, 0
    %vm111 = vcmp.lt.s32.totalorder %v91, 0
    %vm112 = vcmp.lt.s32.totalorder %v98, 0
    %vm113 = vcmp.lt.s32.totalorder %v105, 0
    %vm114 = vmand %vm110, %vm106
    %vm115 = vmand %vm111, %vm107
    %vm116 = vmand %vm112, %vm108
    %vm117 = vmand %vm113, %vm109
    %v118 = vadd.s32 %v84, 16
    %v119 = vadd.s32 %v91, 16
    %v120 = vadd.s32 %v98, 16
    %v121 = vadd.s32 %v105, 16
    %v122 = vsel %vm114, %v118, %v84
    %v123 = vsel %vm115, %v119, %v91
    %v124 = vsel %vm116, %v120, %v98
    %v125 = vsel %vm117, %v121, %v105
    %vm126 = vcmp.ne.s32.totalorder %v122, 0
    %vm127 = vcmp.ne.s32.totalorder %v123, 0
    %vm128 = vcmp.ne.s32.totalorder %v124, 0
    %vm129 = vcmp.ne.s32.totalorder %v125, 0
    %v130 = vsel %vm126, 1, 0
    %v131 = vsel %vm127, 1, 0
    %v132 = vsel %vm128, 1, 0
    %v133 = vsel %vm129, 1, 0
    %v134 = vcvt.s32.f32 %v130
    %v135 = vcvt.s32.f32 %v131
    %v136 = vcvt.s32.f32 %v132
    %v137 = vcvt.s32.f32 %v133
    %vm138 = vcmp.ne.s32.totalorder %v122, 15
    %vm139 = vcmp.ne.s32.totalorder %v123, 15
    %vm140 = vcmp.ne.s32.totalorder %v124, 15
    %vm141 = vcmp.ne.s32.totalorder %v125, 15
    %v142 = vsel %vm138, 1, 0
    %v143 = vsel %vm139, 1, 0
    %v144 = vsel %vm140, 1, 0
    %v145 = vsel %vm141, 1, 0
    %v146 = vcvt.s32.f32 %v142
    %v147 = vcvt.s32.f32 %v143
    %v148 = vcvt.s32.f32 %v144
    %v149 = vcvt.s32.f32 %v145
    %v150 = vld [vmem:[#allocation2 + $0x10] sm:$0xff]
    %v151 = vld [vmem:[#allocation2 + $0x18] sm:$0xff]
    %v152 = vld [vmem:[#allocation2 + $0x20] sm:$0xff]
    %v153 = vld [vmem:[#allocation2 + $0x28] sm:$0xff]
    %v154 = vld [vmem:[#allocation2 + $0x30] sm:$0xff]
    %v155 = vld [vmem:[#allocation2 + $0x38] sm:$0xff]
    %v156 = vld [vmem:[#allocation2 + $0x40] sm:$0xff]
    %v157 = vld [vmem:[#allocation2 + $0x48] sm:$0xff]
    %v158 = vld [vmem:[#allocation2 + $0x50] sm:$0xff]
    %v159 = vld [vmem:[#allocation2 + $0x58] sm:$0xff]
    %v160 = vld [vmem:[#allocation2 + $0x60] sm:$0xff]
    %v161 = vld [vmem:[#allocation2 + $0x68] sm:$0xff]
    %v162 = vld [vmem:[#allocation2 + $0x70] sm:$0xff]
    %v163 = vld [vmem:[#allocation2 + $0x78] sm:$0xff]
    %v164 = vld [vmem:[#allocation2 + $0x80] sm:$0xff]
    %v165 = vld [vmem:[#allocation2 + $0x88] sm:$0xff]
    %v166 = vpack.c.bf16 %v151, %v150
    %v167 = vpack.c.bf16 %v153, %v152
    %v168 = vpack.c.bf16 %v155, %v154
    %v169 = vpack.c.bf16 %v157, %v156
    %v170 = vpack.c.bf16 %v159, %v158
    %v171 = vpack.c.bf16 %v161, %v160
    %v172 = vpack.c.bf16 %v163, %v162
    %v173 = vpack.c.bf16 %v165, %v164
    %v174 = vld [vmem:[#allocation2 + $0x90] sm:$0xff]
    %v175 = vld [vmem:[#allocation2 + $0x98] sm:$0xff]
    %v176 = vld [vmem:[#allocation2 + $0xa0] sm:$0xff]
    %v177 = vld [vmem:[#allocation2 + $0xa8] sm:$0xff]
    %v178 = vld [vmem:[#allocation2 + $0xb0] sm:$0xff]
    %v179 = vld [vmem:[#allocation2 + $0xb8] sm:$0xff]
    %v180 = vld [vmem:[#allocation2 + $0xc0] sm:$0xff]
    %v181 = vld [vmem:[#allocation2 + $0xc8] sm:$0xff]
    %v182 = vld [vmem:[#allocation2 + $0xd0] sm:$0xff]
    %v183 = vld [vmem:[#allocation2 + $0xd8] sm:$0xff]
    %v184 = vld [vmem:[#allocation2 + $0xe0] sm:$0xff]
    %v185 = vld [vmem:[#allocation2 + $0xe8] sm:$0xff]
    %v186 = vld [vmem:[#allocation2 + $0xf0] sm:$0xff]
    %v187 = vld [vmem:[#allocation2 + $0xf8] sm:$0xff]
    %v188 = vld [vmem:[#allocation2 + $0x100] sm:$0xff]
    %v189 = vld [vmem:[#allocation2 + $0x108] sm:$0xff]
    %v190 = vpack.c.bf16 %v175, %v174
    %v191 = vpack.c.bf16 %v177, %v176
    %v192 = vpack.c.bf16 %v179, %v178
    %v193 = vpack.c.bf16 %v181, %v180
    %v194 = vpack.c.bf16 %v183, %v182
    %v195 = vpack.c.bf16 %v185, %v184
    %v196 = vpack.c.bf16 %v187, %v186
    %v197 = vpack.c.bf16 %v189, %v188
    %v198 = vld [vmem:[#allocation2 + $0x110] sm:$0xff]
    %v199 = vld [vmem:[#allocation2 + $0x118] sm:$0xff]
    %v200 = vld [vmem:[#allocation2 + $0x120] sm:$0xff]
    %v201 = vld [vmem:[#allocation2 + $0x128] sm:$0xff]
    %v202 = vld [vmem:[#allocation2 + $0x130] sm:$0xff]
    %v203 = vld [vmem:[#allocation2 + $0x138] sm:$0xff]
    %v204 = vld [vmem:[#allocation2 + $0x140] sm:$0xff]
    %v205 = vld [vmem:[#allocation2 + $0x148] sm:$0xff]
    %v206 = vld [vmem:[#allocation2 + $0x150] sm:$0xff]
    %v207 = vld [vmem:[#allocation2 + $0x158] sm:$0xff]
    %v208 = vld [vmem:[#allocation2 + $0x160] sm:$0xff]
    %v209 = vld [vmem:[#allocation2 + $0x168] sm:$0xff]
    %v210 = vld [vmem:[#allocation2 + $0x170] sm:$0xff]
    %v211 = vld [vmem:[#allocation2 + $0x178] sm:$0xff]
    %v212 = vld [vmem:[#allocation2 + $0x180] sm:$0xff]
    %v213 = vld [vmem:[#allocation2 + $0x188] sm:$0xff]
    %v214 = vpack.c.bf16 %v199, %v198
    %v215 = vpack.c.bf16 %v201, %v200
    %v216 = vpack.c.bf16 %v203, %v202
    %v217 = vpack.c.bf16 %v205, %v204
    %v218 = vpack.c.bf16 %v207, %v206
    %v219 = vpack.c.bf16 %v209, %v208
    %v220 = vpack.c.bf16 %v211, %v210
    %v221 = vpack.c.bf16 %v213, %v212
    %v222 = vrot.slane %v69, 7
    %v223 = vrot.slane %v70, 7
    %v224 = vrot.slane %v71, 7
    %v225 = vrot.slane %v72, 7
    %vm226 = vcmp.lt.s32.totalorder %v74, 1
    %v227 = vsel %vm226, %v224, %v225
    %v228 = vsel %vm226, %v223, %v224
    %v229 = vsel %vm226, %v222, %v223
    %v230 = vsel %vm226, %v225, %v222
    %v231 = vmul.f32 %v230, %v134
    %v232 = vmul.f32 %v229, %v135
    %v233 = vmul.f32 %v228, %v136
    %v234 = vmul.f32 %v227, %v137
    %v235 = vpack.c.bf16 %v232, %v231
    %v236 = vpack.c.bf16 %v234, %v233
    %v237 = vrot.slane %v69, 1
    %v238 = vrot.slane %v70, 1
    %v239 = vrot.slane %v71, 1
    %v240 = vrot.slane %v72, 1
    %vm241 = vcmp.lt.s32.totalorder %v74, 7
    %v242 = vsel %vm241, %v239, %v240
    %v243 = vsel %vm241, %v238, %v239
    %v244 = vsel %vm241, %v237, %v238
    %v245 = vsel %vm241, %v240, %v237
    %v246 = vmul.f32 %v244, %v146
    %v247 = vmul.f32 %v243, %v147
    %v248 = vmul.f32 %v242, %v148
    %v249 = vmul.f32 %v245, %v149
    %v250 = vpack.c.bf16 %v247, %v246
    %v251 = vpack.c.bf16 %v249, %v248
    %v252 = vpack.c.bf16 %v70, %v69
    %v253 = vpack.c.bf16 %v72, %v71
    %254 = vmatpush.bf16.msra.mxu0 %v197
    %255 = vmatpush.bf16.msra.mxu0 %v196
    %256 = vmatpush.bf16.msra.mxu0 %v195
    %257 = vmatpush.bf16.msra.mxu0 %v194
    %258 = vmatpush.bf16.msra.mxu0 %v193
    %259 = vmatpush.bf16.msra.mxu0 %v192
    %260 = vmatpush.bf16.msra.mxu0 %v191
    %261 = vmatpush.bf16.msra.mxu0 %v190
    %262 = vmatmul.bf16.gmra.mxu0 %v252
    %v263 = vpop.f32.mrf.mxu0
    %v264 = vadd.f32 0.0, %v263
    %v265 = vpop.f32.mrf.mxu0
    %v266 = vadd.f32 0.0, %v265
    %267 = vmatmul.bf16.gmra.mxu0 %v253
    %v268 = vpop.f32.mrf.mxu0
    %v269 = vadd.f32 0.0, %v268
    %v270 = vpop.f32.mrf.mxu0
    %v271 = vadd.f32 0.0, %v270
    %272 = vdwg.mxu0
    %273 = vmatpush.bf16.msra.mxu0 %v173
    %274 = vmatpush.bf16.msra.mxu0 %v172
    %275 = vmatpush.bf16.msra.mxu0 %v171
    %276 = vmatpush.bf16.msra.mxu0 %v170
    %277 = vmatpush.bf16.msra.mxu0 %v169
    %278 = vmatpush.bf16.msra.mxu0 %v168
    %279 = vmatpush.bf16.msra.mxu0 %v167
    %280 = vmatpush.bf16.msra.mxu0 %v166
    %281 = vmatmul.bf16.gmra.mxu0 %v235
    %v282 = vpop.f32.mrf.mxu0
    %v283 = vadd.f32 %v264, %v282
    %v284 = vpop.f32.mrf.mxu0
    %v285 = vadd.f32 %v266, %v284
    %286 = vmatmul.bf16.gmra.mxu0 %v236
    %v287 = vpop.f32.mrf.mxu0
    %v288 = vadd.f32 %v269, %v287
    %v289 = vpop.f32.mrf.mxu0
    %v290 = vadd.f32 %v271, %v289
    %291 = vdwg.mxu0
    %292 = vmatpush.bf16.msra.mxu0 %v221
    %293 = vmatpush.bf16.msra.mxu0 %v220
    %294 = vmatpush.bf16.msra.mxu0 %v219
    %295 = vmatpush.bf16.msra.mxu0 %v218
    %296 = vmatpush.bf16.msra.mxu0 %v217
    %297 = vmatpush.bf16.msra.mxu0 %v216
    %298 = vmatpush.bf16.msra.mxu0 %v215
    %299 = vmatpush.bf16.msra.mxu0 %v214
    %300 = vmatmul.bf16.gmra.mxu0 %v250
    %v301 = vpop.f32.mrf.mxu0
    %v302 = vadd.f32 0.0, %v301
    %v303 = vpop.f32.mrf.mxu0
    %v304 = vadd.f32 0.0, %v303
    %305 = vmatmul.bf16.gmra.mxu0 %v251
    %v306 = vpop.f32.mrf.mxu0
    %v307 = vadd.f32 0.0, %v306
    %v308 = vpop.f32.mrf.mxu0
    %v309 = vadd.f32 0.0, %v308
    %310 = vdwg.mxu0
    %v311 = vadd.f32 %v283, %v302
    %v312 = vadd.f32 %v285, %v304
    %v313 = vadd.f32 %v288, %v307
    %v314 = vadd.f32 %v290, %v309
    %v315 = vperm.slane %v29, 1
    %v316 = vadd.f32 %v311, %v315
    %v317 = vadd.f32 %v312, %v315
    %v318 = vadd.f32 %v313, %v315
    %v319 = vadd.f32 %v314, %v315
    %v320 = vtanh.pop %v316
    %v321 = vtanh.pop %v317
    %v322 = vtanh.pop %v318
    %v323 = vtanh.pop %v319
    %v324 = vld [vmem:[#allocation2 + $0x190] sm:$0xff]
    %v325 = vld [vmem:[#allocation2 + $0x198] sm:$0xff]
    %v326 = vld [vmem:[#allocation2 + $0x1a0] sm:$0xff]
    %v327 = vld [vmem:[#allocation2 + $0x1a8] sm:$0xff]
    %v328 = vld [vmem:[#allocation2 + $0x1b0] sm:$0xff]
    %v329 = vld [vmem:[#allocation2 + $0x1b8] sm:$0xff]
    %v330 = vld [vmem:[#allocation2 + $0x1c0] sm:$0xff]
    %v331 = vld [vmem:[#allocation2 + $0x1c8] sm:$0xff]
    %v332 = vld [vmem:[#allocation2 + $0x1d0] sm:$0xff]
    %v333 = vld [vmem:[#allocation2 + $0x1d8] sm:$0xff]
    %v334 = vld [vmem:[#allocation2 + $0x1e0] sm:$0xff]
    %v335 = vld [vmem:[#allocation2 + $0x1e8] sm:$0xff]
    %v336 = vld [vmem:[#allocation2 + $0x1f0] sm:$0xff]
    %v337 = vld [vmem:[#allocation2 + $0x1f8] sm:$0xff]
    %v338 = vld [vmem:[#allocation2 + $0x200] sm:$0xff]
    %v339 = vld [vmem:[#allocation2 + $0x208] sm:$0xff]
    %v340 = vpack.c.bf16 %v325, %v324
    %v341 = vpack.c.bf16 %v327, %v326
    %v342 = vpack.c.bf16 %v329, %v328
    %v343 = vpack.c.bf16 %v331, %v330
    %v344 = vpack.c.bf16 %v333, %v332
    %v345 = vpack.c.bf16 %v335, %v334
    %v346 = vpack.c.bf16 %v337, %v336
    %v347 = vpack.c.bf16 %v339, %v338
    %v348 = vld [vmem:[#allocation2 + $0x210] sm:$0xff]
    %v349 = vld [vmem:[#allocation2 + $0x218] sm:$0xff]
    %v350 = vld [vmem:[#allocation2 + $0x220] sm:$0xff]
    %v351 = vld [vmem:[#allocation2 + $0x228] sm:$0xff]
    %v352 = vld [vmem:[#allocation2 + $0x230] sm:$0xff]
    %v353 = vld [vmem:[#allocation2 + $0x238] sm:$0xff]
    %v354 = vld [vmem:[#allocation2 + $0x240] sm:$0xff]
    %v355 = vld [vmem:[#allocation2 + $0x248] sm:$0xff]
    %v356 = vld [vmem:[#allocation2 + $0x250] sm:$0xff]
    %v357 = vld [vmem:[#allocation2 + $0x258] sm:$0xff]
    %v358 = vld [vmem:[#allocation2 + $0x260] sm:$0xff]
    %v359 = vld [vmem:[#allocation2 + $0x268] sm:$0xff]
    %v360 = vld [vmem:[#allocation2 + $0x270] sm:$0xff]
    %v361 = vld [vmem:[#allocation2 + $0x278] sm:$0xff]
    %v362 = vld [vmem:[#allocation2 + $0x280] sm:$0xff]
    %v363 = vld [vmem:[#allocation2 + $0x288] sm:$0xff]
    %v364 = vpack.c.bf16 %v349, %v348
    %v365 = vpack.c.bf16 %v351, %v350
    %v366 = vpack.c.bf16 %v353, %v352
    %v367 = vpack.c.bf16 %v355, %v354
    %v368 = vpack.c.bf16 %v357, %v356
    %v369 = vpack.c.bf16 %v359, %v358
    %v370 = vpack.c.bf16 %v361, %v360
    %v371 = vpack.c.bf16 %v363, %v362
    %v372 = vld [vmem:[#allocation2 + $0x290] sm:$0xff]
    %v373 = vld [vmem:[#allocation2 + $0x298] sm:$0xff]
    %v374 = vld [vmem:[#allocation2 + $0x2a0] sm:$0xff]
    %v375 = vld [vmem:[#allocation2 + $0x2a8] sm:$0xff]
    %v376 = vld [vmem:[#allocation2 + $0x2b0] sm:$0xff]
    %v377 = vld [vmem:[#allocation2 + $0x2b8] sm:$0xff]
    %v378 = vld [vmem:[#allocation2 + $0x2c0] sm:$0xff]
    %v379 = vld [vmem:[#allocation2 + $0x2c8] sm:$0xff]
    %v380 = vld [vmem:[#allocation2 + $0x2d0] sm:$0xff]
    %v381 = vld [vmem:[#allocation2 + $0x2d8] sm:$0xff]
    %v382 = vld [vmem:[#allocation2 + $0x2e0] sm:$0xff]
    %v383 = vld [vmem:[#allocation2 + $0x2e8] sm:$0xff]
    %v384 = vld [vmem:[#allocation2 + $0x2f0] sm:$0xff]
    %v385 = vld [vmem:[#allocation2 + $0x2f8] sm:$0xff]
    %v386 = vld [vmem:[#allocation2 + $0x300] sm:$0xff]
    %v387 = vld [vmem:[#allocation2 + $0x308] sm:$0xff]
    %v388 = vpack.c.bf16 %v373, %v372
    %v389 = vpack.c.bf16 %v375, %v374
    %v390 = vpack.c.bf16 %v377, %v376
    %v391 = vpack.c.bf16 %v379, %v378
    %v392 = vpack.c.bf16 %v381, %v380
    %v393 = vpack.c.bf16 %v383, %v382
    %v394 = vpack.c.bf16 %v385, %v384
    %v395 = vpack.c.bf16 %v387, %v386
    %v396 = vrot.slane %v320, 7
    %v397 = vrot.slane %v321, 7
    %v398 = vrot.slane %v322, 7
    %v399 = vrot.slane %v323, 7
    %v400 = vsel %vm226, %v398, %v399
    %v401 = vsel %vm226, %v397, %v398
    %v402 = vsel %vm226, %v396, %v397
    %v403 = vsel %vm226, %v399, %v396
    %v404 = vmul.f32 %v403, %v134
    %v405 = vmul.f32 %v402, %v135
    %v406 = vmul.f32 %v401, %v136
    %v407 = vmul.f32 %v400, %v137
    %v408 = vpack.c.bf16 %v405, %v404
    %v409 = vpack.c.bf16 %v407, %v406
    %v410 = vrot.slane %v320, 1
    %v411 = vrot.slane %v321, 1
    %v412 = vrot.slane %v322, 1
    %v413 = vrot.slane %v323, 1
    %v414 = vsel %vm241, %v412, %v413
    %v415 = vsel %vm241, %v411, %v412
    %v416 = vsel %vm241, %v410, %v411
    %v417 = vsel %vm241, %v413, %v410
    %v418 = vmul.f32 %v416, %v146
    %v419 = vmul.f32 %v415, %v147
    %v420 = vmul.f32 %v414, %v148
    %v421 = vmul.f32 %v417, %v149
    %v422 = vpack.c.bf16 %v419, %v418
    %v423 = vpack.c.bf16 %v421, %v420
    %v424 = vpack.c.bf16 %v321, %v320
    %v425 = vpack.c.bf16 %v323, %v322
    %426 = vmatpush.bf16.msra.mxu0 %v371
    %427 = vmatpush.bf16.msra.mxu0 %v370
    %428 = vmatpush.bf16.msra.mxu0 %v369
    %429 = vmatpush.bf16.msra.mxu0 %v368
    %430 = vmatpush.bf16.msra.mxu0 %v367
    %431 = vmatpush.bf16.msra.mxu0 %v366
    %432 = vmatpush.bf16.msra.mxu0 %v365
    %433 = vmatpush.bf16.msra.mxu0 %v364
    %434 = vmatmul.bf16.gmra.mxu0 %v424
    %v435 = vpop.f32.mrf.mxu0
    %v436 = vadd.f32 0.0, %v435
    %v437 = vpop.f32.mrf.mxu0
    %v438 = vadd.f32 0.0, %v437
    %439 = vmatmul.bf16.gmra.mxu0 %v425
    %v440 = vpop.f32.mrf.mxu0
    %v441 = vadd.f32 0.0, %v440
    %v442 = vpop.f32.mrf.mxu0
    %v443 = vadd.f32 0.0, %v442
    %444 = vdwg.mxu0
    %445 = vmatpush.bf16.msra.mxu0 %v347
    %446 = vmatpush.bf16.msra.mxu0 %v346
    %447 = vmatpush.bf16.msra.mxu0 %v345
    %448 = vmatpush.bf16.msra.mxu0 %v344
    %449 = vmatpush.bf16.msra.mxu0 %v343
    %450 = vmatpush.bf16.msra.mxu0 %v342
    %451 = vmatpush.bf16.msra.mxu0 %v341
    %452 = vmatpush.bf16.msra.mxu0 %v340
    %453 = vmatmul.bf16.gmra.mxu0 %v408
    %v454 = vpop.f32.mrf.mxu0
    %v455 = vadd.f32 %v436, %v454
    %v456 = vpop.f32.mrf.mxu0
    %v457 = vadd.f32 %v438, %v456
    %458 = vmatmul.bf16.gmra.mxu0 %v409
    %v459 = vpop.f32.mrf.mxu0
    %v460 = vadd.f32 %v441, %v459
    %v461 = vpop.f32.mrf.mxu0
    %v462 = vadd.f32 %v443, %v461
    %463 = vdwg.mxu0
    %464 = vmatpush.bf16.msra.mxu0 %v395
    %465 = vmatpush.bf16.msra.mxu0 %v394
    %466 = vmatpush.bf16.msra.mxu0 %v393
    %467 = vmatpush.bf16.msra.mxu0 %v392
    %468 = vmatpush.bf16.msra.mxu0 %v391
    %469 = vmatpush.bf16.msra.mxu0 %v390
    %470 = vmatpush.bf16.msra.mxu0 %v389
    %471 = vmatpush.bf16.msra.mxu0 %v388
    %472 = vmatmul.bf16.gmra.mxu0 %v422
    %v473 = vpop.f32.mrf.mxu0
    %v474 = vadd.f32 0.0, %v473
    %v475 = vpop.f32.mrf.mxu0
    %v476 = vadd.f32 0.0, %v475
    %477 = vmatmul.bf16.gmra.mxu0 %v423
    %v478 = vpop.f32.mrf.mxu0
    %v479 = vadd.f32 0.0, %v478
    %v480 = vpop.f32.mrf.mxu0
    %v481 = vadd.f32 0.0, %v480
    %482 = vdwg.mxu0
    %v483 = vadd.f32 %v455, %v474
    %v484 = vadd.f32 %v457, %v476
    %v485 = vadd.f32 %v460, %v479
    %v486 = vadd.f32 %v462, %v481
    %v487 = vperm.slane %v29, 2
    %v488 = vadd.f32 %v483, %v487
    %v489 = vadd.f32 %v484, %v487
    %v490 = vadd.f32 %v485, %v487
    %v491 = vadd.f32 %v486, %v487
    %v492 = vtanh.pop %v488
    %v493 = vtanh.pop %v489
    %v494 = vtanh.pop %v490
    %v495 = vtanh.pop %v491
    %496 = vst [vmem:[#allocation5] sm:$0xff] %v492
    %497 = vst [vmem:[#allocation5 + $0x8] sm:$0xff] %v493
    %498 = vst [vmem:[#allocation5 + $0x10] sm:$0xff] %v494
    %499 = vst [vmem:[#allocation5 + $0x18] sm:$0xff] %v495
    // Predicated region
    $region14: #{tpu_custom_call.1} parent=1 // pred_check
      _
    $region15: #{tpu_custom_call.1} parent=1 // pred_check_branch
      %501 = sbr.rel (0) target = $region17
    $region16: #{tpu_custom_call.1} parent=1 // pred_region
      %503 = vsyncadd [#allocation4], 0
      %s504 = sshll.u32 [#allocation5], 4
      %s505 = int_to_ptr.vmem [resolvable:$true] %s504
      %s506 = sshll.u32 %s2, 4
      %s507 = int_to_ptr.hbm [resolvable:$true] %s506
      %512 = dma.vmem_to_hbm [thread:$0]  %s505, 512, %s507, [#allocation4], 128, 128, 8
    $region17: #{tpu_custom_call.1} parent=1 // pred_fallthru
      _
    // Predicated region
    $region18: #{tpu_custom_call.1} parent=1 // pred_check
      _
    $region19: #{tpu_custom_call.1} parent=1 // pred_check_branch
      %514 = sbr.rel (0) target = $region21
    $region20: #{tpu_custom_call.1} parent=1 // pred_region
      %516 = dma.done [#allocation4], 512
    $region21: #{tpu_custom_call.1} parent=1 // pred_fallthru
      _
    %517 = vsyncpa [#allocation3], 1
    %518 = vsyncpa [#allocation4], 1

</llo_original>
